<compile_context>
chip_gen: v5e
topology: v5e:2x2
jax: 0.10.0
libtpu: 0.0.40
codegen_flags: <defaults>
</compile_context>

<pallas_src>
import functools

import jax
import jax.numpy as jnp
from jax.experimental import pallas as pl
from jax.experimental.pallas import tpu as pltpu

_LANE = 128
_WIDTH_CANDIDATES = (8192, 4096, 2048, 1024, 512, 256, 128)
_TINY_BYTES = 64 * 1024                   # below this, fused XLA wins
_DEFAULT_BLOCK_BYTES = 6 * 1024 * 1024    # ~6 MiB per block
_VMEM_LIMIT_BYTES = 48 * 1024 * 1024      # 2 bufs x (in+out) x 6 MiB = 24 MiB << 48 MiB
                                          # (v7x physical 64 MiB; v5e/v6e 128 MiB)


def _device_kind() -> str:
    try:
        return jax.devices()[0].device_kind.lower()
    except Exception:
        return ""


def _logistic_h2_kernel(params_ref, x_ref, o_ref, *, compute_dtype):
    # params_ref lives in SMEM: [h, a, b] with h = sigmoid(logit_h) already
    # computed in the wrapper. astype to the same dtype is a trace-time no-op.
    h = params_ref[0].astype(compute_dtype)
    a = params_ref[1].astype(compute_dtype)
    b = params_ref[2].astype(compute_dtype)
    x = x_ref[...].astype(compute_dtype)
    # sigmoid lowers to exp + reciprocal on the EUP slot; a*x+b and h* on VALU.
    y = h * jax.nn.sigmoid(a * x + b)
    o_ref[...] = y.astype(o_ref.dtype)


def logistic_h2(x, logit_h=-3.892, a=1.0, b=1.0, *, force_pallas=False,
                block_bytes=None):
    """Pallas implementation of Logistic_H2.forward. Same shape/dtype out."""
    orig_shape = x.shape
    orig_dtype = x.dtype
    n = x.size
    itemsize = orig_dtype.itemsize

    # Precompute h = sigmoid(logit_h) on the scalars (not on x).
    h = jax.nn.sigmoid(jnp.float32(logit_h))
    a_f = jnp.asarray(a, jnp.float32)
    b_f = jnp.asarray(b, jnp.float32)

    # Tiny-input fast path: pallas_call dispatch cost dominates below ~64 KiB.
    if not force_pallas and n * itemsize < _TINY_BYTES:
        y = h * jax.nn.sigmoid(a_f * x.astype(jnp.float32) + b_f)
        return y.astype(orig_dtype)

    params = jnp.stack([h, a_f, b_f])

    # Flatten to a lane-dense 2-D slab. Only a <128-element ragged lane tail
    # ever needs padding; ragged rows are handled by Pallas boundary masking.
    flat = x.reshape(-1)
    pad = (-n) % _LANE
    if pad:
        # TODO(synk): a fully pad-free ragged-lane path would avoid this extra
        # HBM round trip for large, lane-unaligned inputs.
        flat = jnp.pad(flat, (0, pad))
    total = flat.size

    width = _LANE
    for w in _WIDTH_CANDIDATES:
        if total % w == 0:
            width = w
            break
    rows = total // width
    x2d = flat.reshape(rows, width)

    # Block sizing: ~6 MiB per block; the last row-block may be ragged and is
    # masked by Pallas, so rows need not divide evenly (no whole-array blocks).
    target = block_bytes if block_bytes is not None else _DEFAULT_BLOCK_BYTES
    block_rows = max(8, target // (width * itemsize))
    if block_rows >= rows:
        block_rows = rows            # genuinely small input: one modest block
        grid = (1,)
    else:
        block_rows = (block_rows // 8) * 8   # sublane-aligned
        grid = (pl.cdiv(rows, block_rows),)

    # bf16-native compute on v6e/v7x; v5e lacks bf16 VPU/EUP so keep f32 there.
    if orig_dtype == jnp.bfloat16 and "v5" not in _device_kind():
        compute_dtype = jnp.bfloat16
    else:
        compute_dtype = jnp.float32

    kernel = functools.partial(_logistic_h2_kernel, compute_dtype=compute_dtype)

    out2d = pl.pallas_call(
        kernel,
        out_shape=jax.ShapeDtypeStruct((rows, width), orig_dtype),
        grid=grid,
        in_specs=[
            pl.BlockSpec(memory_space=pltpu.MemorySpace.SMEM),   # [h, a, b]
            pl.BlockSpec((block_rows, width), lambda i: (i, 0)),
        ],
        out_specs=pl.BlockSpec((block_rows, width), lambda i: (i, 0)),
        compiler_params=pltpu.CompilerParams(
            # Pure HBM streaming: "parallel" lets v7x split the grid across
            # both TensorCores; no-op on single-TC v5e/v6e.
            dimension_semantics=("parallel",),
            vmem_limit_bytes=_VMEM_LIMIT_BYTES,
        ),
    )(params, x2d)

    out_flat = out2d.reshape(-1)
    if pad:
        out_flat = out_flat[:n]
    return out_flat.reshape(orig_shape)


if __name__ == "__main__":
    # Deterministic parameter init matching Logistic_H2.__init__ defaults.
    LOGIT_H = -3.892
    SLOPE = 1.0
    INTERCEPT = 1.0

    def ref_fn(x):
        hh = 1.0 / (1.0 + jnp.exp(-jnp.float32(LOGIT_H)))
        y = hh * (1.0 / (1.0 + jnp.exp(-(SLOPE * x.astype(jnp.float32) + INTERCEPT))))
        return y.astype(x.dtype)

    key = jax.random.PRNGKey(0)
    k1, k2, k3 = jax.random.split(key, 3)

    # 1) Module-sized input (NCHW 2x4x16x16), forced through the Pallas path.
    x1 = jax.random.normal(k1, (2, 4, 16, 16), dtype=jnp.float32)
    out1 = jax.block_until_ready(
        logistic_h2(x1, LOGIT_H, SLOPE, INTERCEPT, force_pallas=True))
    assert out1.shape == x1.shape and out1.dtype == x1.dtype
    assert jnp.allclose(out1, ref_fn(x1), atol=1e-6, rtol=1e-6)

    # Auto path (tiny input -> fused XLA fast path) must agree too.
    out1_auto = jax.block_until_ready(logistic_h2(x1, LOGIT_H, SLOPE, INTERCEPT))
    assert jnp.allclose(out1_auto, ref_fn(x1), atol=1e-6, rtol=1e-6)

    # 2) Multi-block grid with a ragged last row-block (small block_bytes knob
    #    exercises the tiled/masked path at small scale).
    x2 = jax.random.normal(k2, (2, 4, 64, 66), dtype=jnp.float32)
    out2 = jax.block_until_ready(
        logistic_h2(x2, LOGIT_H, SLOPE, INTERCEPT, block_bytes=64 * 1024))
    assert jnp.allclose(out2, ref_fn(x2), atol=1e-6, rtol=1e-6)

    # 3) Lane-unaligned element count (pads the <128-element tail, slices back).
    x3 = jax.random.normal(k3, (3, 5, 7, 11), dtype=jnp.float32)
    out3 = jax.block_until_ready(
        logistic_h2(x3, LOGIT_H, SLOPE, INTERCEPT, force_pallas=True))
    assert jnp.allclose(out3, ref_fn(x3), atol=1e-6, rtol=1e-6)

    print("KERNEL_OK")
</pallas_src>

<mosaic_0001>
module attributes {stable_mosaic.version = 11 : i64} {
  func.func @_logistic_h2_kernel(%arg0: i32, %arg1: memref<3xf32, #tpu.memory_space<smem>>, %arg2: memref<1x2048xf32, #tpu.memory_space<vmem>>, %arg3: memref<1x2048xf32, #tpu.memory_space<vmem>>) attributes {dimension_semantics = [#tpu.dimension_semantics<parallel>], iteration_bounds = array<i64: 1>, scalar_prefetch = 0 : i64, scratch_operands = 0 : i64, tpu.core_type = #tpu.core_type<tc>, window_params = [{transform_indices = @transform_0, window_bounds = array<i64: 3>}, {transform_indices = @transform_1, window_bounds = array<i64: 1, 2048>}, {transform_indices = @transform_2, window_bounds = array<i64: 1, 2048>}]} {
    %c0 = arith.constant 0 : index
    %0 = memref.load %arg1[%c0] : memref<3xf32, #tpu.memory_space<smem>>
    %c1 = arith.constant 1 : index
    %1 = memref.load %arg1[%c1] : memref<3xf32, #tpu.memory_space<smem>>
    %c2 = arith.constant 2 : index
    %2 = memref.load %arg1[%c2] : memref<3xf32, #tpu.memory_space<smem>>
    %c0_0 = arith.constant 0 : index
    %c0_1 = arith.constant 0 : index
    %3 = vector.load %arg2[%c0_0, %c0_1] : memref<1x2048xf32, #tpu.memory_space<vmem>>, vector<1x2048xf32>
    %4 = vector.broadcast %1 : f32 to vector<1x2048xf32>
    %5 = arith.mulf %4, %3 : vector<1x2048xf32>
    %6 = vector.broadcast %2 : f32 to vector<1x2048xf32>
    %7 = arith.addf %5, %6 : vector<1x2048xf32>
    %8 = arith.negf %7 : vector<1x2048xf32>
    %9 = math.exp %8 : vector<1x2048xf32>
    %cst = arith.constant 1.000000e+00 : f32
    %10 = vector.broadcast %cst : f32 to vector<1x2048xf32>
    %11 = arith.addf %10, %9 : vector<1x2048xf32>
    %12 = arith.divf %10, %11 : vector<1x2048xf32>
    %13 = vector.broadcast %0 : f32 to vector<1x2048xf32>
    %14 = arith.mulf %13, %12 : vector<1x2048xf32>
    %c0_2 = arith.constant 0 : index
    %c0_3 = arith.constant 0 : index
    %15 = vector.load %arg3[%c0_2, %c0_3] : memref<1x2048xf32, #tpu.memory_space<vmem>>, vector<1x2048xf32>
    tpu.vector_store %arg3[%c0_2, %c0_3], %14 {strides = array<i32>} : memref<1x2048xf32, #tpu.memory_space<vmem>>, vector<1x2048xf32>,
    return
  }
  func.func @transform_0(%arg0: i32) -> i32 {
    %c0_i32 = arith.constant 0 : i32
    %c0_i32_0 = arith.constant 0 : i32
    return %c0_i32 : i32
  }
  func.func @transform_1(%arg0: i32) -> (i32, i32) {
    %c0_i32 = arith.constant 0 : i32
    %c0_i32_0 = arith.constant 0 : i32
    return %arg0, %c0_i32 : i32, i32
  }
  func.func @transform_2(%arg0: i32) -> (i32, i32) {
    %c0_i32 = arith.constant 0 : i32
    %c0_i32_0 = arith.constant 0 : i32
    return %arg0, %c0_i32 : i32, i32
  }
}

</mosaic_0001>

<llo_original>
// kernel: tpu_custom_call.1
$region0: #{tpu_custom_call.1}
  #allocation0 [shape = 'u32[]', space=smem, size = 0x4, offset = 0x4, fixed_abs, tag = 'smem constant byte address 0x4 - core index']
  #allocation1 [shape = 'u32[72,128]{1,0:T(1,128)}', space=vmem, size = 0x9000, scoped, tag = 'internal scratch']
  %s0 = inlined_call_operand.hbm [shape: f32[3], index: 0, kind: input, shape index: {}]
  %s1 = inlined_call_operand.hbm [shape: f32[1,2048], index: 1, kind: input, shape index: {}]
  %s2 = inlined_call_operand.hbm [shape: f32[1,2048], index: 2, kind: output, shape index: {}]
  %s3 = sld [smem:[#allocation0]]
  $region26: #{tpu_custom_call.1} parent=0
    _
  %s5 = ssub.s32 1, %s3
  %s6 = scalar_select 0, %s5, %s3
  $region1: #{tpu_custom_call.1} parent=0
    #allocation2 [shape = 'u8[512]{0}', space=smem, size = 0x200, scoped, tag = 'input window, operand 0, single buffered']
    #allocation3 [shape = 's32[1]{0}', space=sflag, size = 0x4, scoped, tag = 'scoped memory for tpu_custom_call.1']
    #allocation4 [shape = 's32[1]{0}', space=sflag, size = 0x4, scoped, tag = 'scoped memory for tpu_custom_call.1']
    #allocation5 [shape = 's32[1]{0}', space=sflag, size = 0x4, scoped, tag = 'scoped memory for tpu_custom_call.1']
    #allocation6 [shape = 'u8[8192]{0}', space=vmem, size = 0x2000, scoped, tag = 'input window, operand 1, single buffered']
    #allocation7 [shape = 'u8[8192]{0}', space=vmem, size = 0x2000, scoped, tag = 'output window, operand 0, single buffered']
    %7 = vsyncpa [#allocation5], 0
    %8 = vsyncpa [#allocation3], 0
    %9 = vsyncpa [#allocation4], 0
    // Predicated region
    $region2: #{tpu_custom_call.1} parent=1 // pred_check
      _
    $region3: #{tpu_custom_call.1} parent=1 // pred_check_branch
      %11 = sbr.rel (0) target = $region5
    $region4: #{tpu_custom_call.1} parent=1 // pred_region
      %13 = vsyncadd [#allocation5], 0
      %s15 = sshll.u32 %s0, 4
      %s16 = int_to_ptr.hbm [resolvable:$true] %s15
      %18 = dma.hbm_to_smem %s16, 16, [#allocation2], [#allocation5]
    $region5: #{tpu_custom_call.1} parent=1 // pred_fallthru
      _
    // Predicated region
    $region6: #{tpu_custom_call.1} parent=1 // pred_check
      _
    $region7: #{tpu_custom_call.1} parent=1 // pred_check_branch
      %20 = sbr.rel (0) target = $region9
    $region8: #{tpu_custom_call.1} parent=1 // pred_region
      %22 = vsyncadd [#allocation3], 0
      %s24 = sshll.u32 %s1, 4
      %s25 = int_to_ptr.hbm [resolvable:$true] %s24
      %s26 = sshll.u32 [#allocation6], 4
      %s27 = int_to_ptr.vmem [resolvable:$true] %s26
      %29 = dma.hbm_to_vmem [thread:$0]  %s25, 256, %s27, [#allocation3]
    $region9: #{tpu_custom_call.1} parent=1 // pred_fallthru
      _
    // Predicated region
    $region10: #{tpu_custom_call.1} parent=1 // pred_check
      _
    $region11: #{tpu_custom_call.1} parent=1 // pred_check_branch
      %31 = sbr.rel (0) target = $region13
    $region12: #{tpu_custom_call.1} parent=1 // pred_region
      %33 = dma.done [#allocation5], 16
    $region13: #{tpu_custom_call.1} parent=1 // pred_fallthru
      _
    // Predicated region
    $region14: #{tpu_custom_call.1} parent=1 // pred_check
      _
    $region15: #{tpu_custom_call.1} parent=1 // pred_check_branch
      %35 = sbr.rel (0) target = $region17
    $region16: #{tpu_custom_call.1} parent=1 // pred_region
      %37 = dma.done [#allocation3], 256
    $region17: #{tpu_custom_call.1} parent=1 // pred_fallthru
      _
    %38 = sfence
    %s39 = sld [smem:[#allocation2]]
    %s40 = sld [smem:[#allocation2 + $0x1]]
    %s41 = sld [smem:[#allocation2 + $0x2]]
    %v42 = vld [vmem:[#allocation6] sm:$0xff]
    %v43 = vld [vmem:[#allocation6 + $0x8] sm:$0xff]
    %v44 = vstv %s40
    %v45 = vmul.f32 %v44, %v42
    %v46 = vmul.f32 %v44, %v43
    %v47 = vstv %s41
    %v48 = vadd.f32 %v45, %v47
    %v49 = vadd.f32 %v46, %v47
    %v50 = vxor.u32 %v48, 2147483648
    %v51 = vxor.u32 %v49, 2147483648
    %v52 = vmul.f32 %v50, 1.442695
    %v53 = vpow.pop %v52
    %v54 = vmul.f32 %v51, 1.442695
    %v55 = vpow.pop %v54
    %v56 = vadd.f32 %v53, 1.0
    %v57 = vadd.f32 %v55, 1.0
    %v58 = vrcp.pop %v56
    %v59 = vmul.f32 %v56, %v58
    %v60 = vsub.f32 1.0, %v59
    %v61 = vmul.f32 %v58, %v60
    %v62 = vadd.f32 %v58, %v61
    %vm63 = vweird.f32 %v56
    %vm64 = vweird.f32 %v58
    %vm65 = vmor %vm63, %vm64
    %v66 = vsel %vm65, %v58, %v62
    %v67 = vand.u32 2147483647, %v56
    %vm68 = vcmp.eq.f32.partialorder %v67, 8.507059e+37
    %v69 = vand.u32 %v56, 2147483648
    %v70 = vor.u32 1.1754944e-38, %v69
    %v71 = vsel %vm68, %v70, %v66
    %v72 = vmul.f32 1.0, %v71
    %v73 = vrcp.pop %v57
    %v74 = vmul.f32 %v57, %v73
    %v75 = vsub.f32 1.0, %v74
    %v76 = vmul.f32 %v73, %v75
    %v77 = vadd.f32 %v73, %v76
    %vm78 = vweird.f32 %v57
    %vm79 = vweird.f32 %v73
    %vm80 = vmor %vm78, %vm79
    %v81 = vsel %vm80, %v73, %v77
    %v82 = vand.u32 2147483647, %v57
    %vm83 = vcmp.eq.f32.partialorder %v82, 8.507059e+37
    %v84 = vand.u32 %v57, 2147483648
    %v85 = vor.u32 1.1754944e-38, %v84
    %v86 = vsel %vm83, %v85, %v81
    %v87 = vmul.f32 1.0, %v86
    %v88 = vstv %s39
    %v89 = vmul.f32 %v88, %v72
    %v90 = vmul.f32 %v88, %v87
    %91 = vst [vmem:[#allocation7] sm:$0xff] %v89
    %92 = vst [vmem:[#allocation7 + $0x8] sm:$0xff] %v90
    // Predicated region
    $region18: #{tpu_custom_call.1} parent=1 // pred_check
      _
    $region19: #{tpu_custom_call.1} parent=1 // pred_check_branch
      %94 = sbr.rel (0) target = $region21
    $region20: #{tpu_custom_call.1} parent=1 // pred_region
      %96 = vsyncadd [#allocation4], 0
      %s98 = sshll.u32 [#allocation7], 4
      %s99 = int_to_ptr.vmem [resolvable:$true] %s98
      %s100 = sshll.u32 %s2, 4
      %s101 = int_to_ptr.hbm [resolvable:$true] %s100
      %103 = dma.vmem_to_hbm [thread:$0]  %s99, 256, %s101, [#allocation4]
    $region21: #{tpu_custom_call.1} parent=1 // pred_fallthru
      _
    // Predicated region
    $region22: #{tpu_custom_call.1} parent=1 // pred_check
      _
    $region23: #{tpu_custom_call.1} parent=1 // pred_check_branch
      %105 = sbr.rel (0) target = $region25
    $region24: #{tpu_custom_call.1} parent=1 // pred_region
      %107 = dma.done [#allocation4], 256
    $region25: #{tpu_custom_call.1} parent=1 // pred_fallthru
      _
    %108 = vsyncpa [#allocation3], 1
    %109 = vsyncpa [#allocation4], 1
    %110 = vsyncpa [#allocation5], 1

</llo_original>
